<compile_context>
chip_gen: v6e
topology: v6e:2x2x1
jax: 0.10.0
libtpu: 0.0.40
codegen_flags: <defaults>
</compile_context>

<pallas_src>
import jax
import jax.numpy as jnp
from jax.experimental import pallas as pl
from jax.experimental.pallas import tpu as pltpu


def _round_up(x, m):
    return (x + m - 1) // m * m


# ---------------------------------------------------------------------------
# Kernel 1: RoPE cos/sin table generation (the RotaryEmbedding.forward)
# ---------------------------------------------------------------------------
def _rope_table_kernel(inv_freq_ref, cos_ref, sin_ref):
    # inv_freq_ref: (1, dim) = concat(inv_freq, inv_freq)   (f32)
    # cos_ref / sin_ref: (block_seq, dim) output tiles       (f32)
    block_seq, dim = cos_ref.shape
    i = pl.program_id(0)

    # Absolute positions for this sequence tile, built in-kernel (no HBM
    # position tensor): int iota -> offset -> f32.
    pos = jax.lax.broadcasted_iota(jnp.int32, (block_seq, dim), 0)
    pos = (pos + i * block_seq).astype(jnp.float32)

    angles = pos * inv_freq_ref[...]           # (block_seq, dim) * (1, dim)
    cos_ref[...] = jnp.cos(angles).astype(cos_ref.dtype)
    sin_ref[...] = jnp.sin(angles).astype(sin_ref.dtype)


def rope_tables(dim, seq_len, base=10000.0, block_seq=None):
    """Equivalent of RotaryEmbedding.forward(x, seq_len) -> (cos, sin),
    each of shape (1, 1, seq_len, dim), float32."""
    half = dim // 2
    inv_freq = 1.0 / (base ** (jnp.arange(0, dim, 2, dtype=jnp.float32) / dim))
    inv_freq_full = jnp.concatenate([inv_freq, inv_freq])[None, :]    # (1, dim)
    assert inv_freq_full.shape == (1, 2 * half)

    if block_seq is None:
        block_seq = min(512, _round_up(seq_len, 8))

    # Exact out_shape, ragged last block handled by Pallas: no padded tail
    # work and no post-kernel HBM->HBM slice copy.
    grid = (pl.cdiv(seq_len, block_seq),)

    cos, sin = pl.pallas_call(
        _rope_table_kernel,
        grid=grid,
        out_shape=(jax.ShapeDtypeStruct((seq_len, dim), jnp.float32),
                   jax.ShapeDtypeStruct((seq_len, dim), jnp.float32)),
        in_specs=[pl.BlockSpec((1, dim), lambda i: (0, 0))],
        out_specs=(pl.BlockSpec((block_seq, dim), lambda i: (i, 0)),
                   pl.BlockSpec((block_seq, dim), lambda i: (i, 0))),
        compiler_params=pltpu.CompilerParams(
            dimension_semantics=("parallel",)),
    )(inv_freq_full)

    return cos[None, None], sin[None, None]    # (1, 1, seq_len, dim) each


# ---------------------------------------------------------------------------
# Kernel 2: fused apply-RoPE — cos/sin generated in-kernel, rotate_half via
# pltpu.roll (XLU), sign folded into sin, all heads per block, bf16 q/k.
# ---------------------------------------------------------------------------
def _apply_rope_fused_kernel(inv_freq_ref, q_ref, k_ref, qo_ref, ko_ref):
    # inv_freq_ref: (1, dim);  q_ref/k_ref/qo_ref/ko_ref: (nH, block_seq, dim)
    nH, block_seq, dim = q_ref.shape
    half = dim // 2
    s = pl.program_id(1)

    # In-kernel table tile — lands on EUP/VPU, which have slack while the
    # kernel is HBM-bound; removes two f32 HBM input streams.
    pos = jax.lax.broadcasted_iota(jnp.int32, (block_seq, dim), 0)
    pos = (pos + s * block_seq).astype(jnp.float32)
    angles = pos * inv_freq_ref[...]                       # (block_seq, dim)
    cos = jnp.cos(angles)
    sin = jnp.sin(angles)

    # rotate_half(x) = concat(-x[:, half:], x[:, :half]) = roll(x, half) * sign
    # with sign = [-1]*half ++ [+1]*half.  Fold the sign into sin once per
    # tile instead of multiplying q_rot and k_rot separately.
    lane = jax.lax.broadcasted_iota(jnp.int32, (block_seq, dim), 1)
    sin_signed = jnp.where(lane < half, -sin, sin)

    cos = cos[None]                                        # (1, bs, dim)
    sin_signed = sin_signed[None]

    q = q_ref[...].astype(jnp.float32)
    k = k_ref[...].astype(jnp.float32)
    q_rot = pltpu.roll(q, shift=half, axis=2)              # XLU, not MXU
    k_rot = pltpu.roll(k, shift=half, axis=2)

    qo_ref[...] = (q * cos + q_rot * sin_signed).astype(qo_ref.dtype)
    ko_ref[...] = (k * cos + k_rot * sin_signed).astype(ko_ref.dtype)


def _pick_block_seq(S, nH, D, itemsize, vmem_budget_bytes=20 * 1024 * 1024):
    # 4 tile streams (q, k in; q, k out), each double-buffered by Pallas.
    per_row = nH * D * itemsize * 4 * 2
    max_rows = max(8, vmem_budget_bytes // per_row)
    block = min(1024, (max_rows // 8) * 8, _round_up(S, 8))
    return max(8, block)


def apply_rotary_pos_emb(q, k, base=10000.0, block_seq=None):
    """q, k: (B, nH, S, D), bf16 (or f32).  Returns q/k with RoPE applied,
    same dtype as inputs.  cos/sin are generated inside the kernel."""
    B, nH, S, D = q.shape
    inv_freq = 1.0 / (base ** (jnp.arange(0, D, 2, dtype=jnp.float32) / D))
    inv_freq_full = jnp.concatenate([inv_freq, inv_freq])[None, :]   # (1, D)

    if block_seq is None:
        block_seq = _pick_block_seq(S, nH, D, jnp.dtype(q.dtype).itemsize)

    # Leading parallel axis B (even in the demo) for v7x 2-TC sharding;
    # ragged last seq block handled by Pallas via pl.cdiv.
    grid = (B, pl.cdiv(S, block_seq))

    qk_spec = pl.BlockSpec((None, nH, block_seq, D), lambda b, s: (b, 0, s, 0))
    iv_spec = pl.BlockSpec((1, D), lambda b, s: (0, 0))

    q_out, k_out = pl.pallas_call(
        _apply_rope_fused_kernel,
        grid=grid,
        out_shape=(jax.ShapeDtypeStruct(q.shape, q.dtype),
                   jax.ShapeDtypeStruct(k.shape, k.dtype)),
        in_specs=[iv_spec, qk_spec, qk_spec],
        out_specs=(qk_spec, qk_spec),
        compiler_params=pltpu.CompilerParams(
            dimension_semantics=("parallel", "parallel"),
            vmem_limit_bytes=32 * 1024 * 1024),   # safe on v7x's 64 MiB VMEM
    )(inv_freq_full, q, k)
    return q_out, k_out


# ---------------------------------------------------------------------------
# Pure-JAX references (mirror the PyTorch module / companion apply fn)
# ---------------------------------------------------------------------------
def _reference_rope_tables(dim, seq_len, base=10000.0):
    inv_freq = 1.0 / (base ** (jnp.arange(0, dim, 2, dtype=jnp.float32) / dim))
    t = jnp.arange(seq_len, dtype=jnp.float32)
    freqs = jnp.outer(t, inv_freq)
    emb = jnp.concatenate((freqs, freqs), axis=-1)
    return jnp.cos(emb)[None, None], jnp.sin(emb)[None, None]


def _reference_apply(q, k, cos, sin):
    def rotate_half(x):
        half = x.shape[-1] // 2
        return jnp.concatenate((-x[..., half:], x[..., :half]), axis=-1)
    return q * cos + rotate_half(q) * sin, k * cos + rotate_half(k) * sin


if __name__ == "__main__":
    # Small shapes consistent with the module: head_dim=128 (real Baichuan2
    # head dim, lane-dense), seq=16, and a (2, 4) batch/head demo for apply.
    DIM, SEQ = 128, 16
    B, NH = 2, 4

    # --- RotaryEmbedding.forward equivalent (f32 tables, exact shape) ---
    cos, sin = rope_tables(DIM, SEQ)
    cos, sin = jax.block_until_ready((cos, sin))
    ref_cos, ref_sin = _reference_rope_tables(DIM, SEQ)
    assert cos.shape == (1, 1, SEQ, DIM) and sin.shape == (1, 1, SEQ, DIM)
    assert jnp.allclose(cos, ref_cos, atol=1e-4, rtol=1e-4)
    assert jnp.allclose(sin, ref_sin, atol=1e-4, rtol=1e-4)

    # --- fused apply-RoPE kernel: bf16 q/k, tables generated in-kernel ---
    key = jax.random.PRNGKey(0)
    kq, kk = jax.random.split(key)
    q = jax.random.normal(kq, (B, NH, SEQ, DIM), dtype=jnp.float32).astype(jnp.bfloat16)
    k = jax.random.normal(kk, (B, NH, SEQ, DIM), dtype=jnp.float32).astype(jnp.bfloat16)

    q_out, k_out = apply_rotary_pos_emb(q, k)
    q_out, k_out = jax.block_until_ready((q_out, k_out))

    ref_q, ref_k = _reference_apply(q.astype(jnp.float32), k.astype(jnp.float32),
                                    ref_cos, ref_sin)
    # bf16 outputs -> ~2^-8 relative rounding; loosen tolerance accordingly.
    assert jnp.allclose(q_out.astype(jnp.float32), ref_q, atol=5e-2, rtol=5e-2)
    assert jnp.allclose(k_out.astype(jnp.float32), ref_k, atol=5e-2, rtol=5e-2)

    # TODO(synk): the torch module's stateful cache-resize / .to(device) logic
    # has no Pallas equivalent; tables are (re)computed per call instead.
    print("KERNEL_OK")
</pallas_src>

<mosaic_0001>
module attributes {stable_mosaic.version = 11 : i64} {
  func.func @_rope_table_kernel(%arg0: i32, %arg1: memref<1x128xf32, #tpu.memory_space<vmem>>, %arg2: memref<16x128xf32, #tpu.memory_space<vmem>>, %arg3: memref<16x128xf32, #tpu.memory_space<vmem>>) attributes {dimension_semantics = [#tpu.dimension_semantics<parallel>], iteration_bounds = array<i64: 1>, scalar_prefetch = 0 : i64, scratch_operands = 0 : i64, tpu.core_type = #tpu.core_type<tc>, window_params = [{pipeline_mode = #tpu.pipeline_mode<synchronous>, transform_indices = @transform_0, window_bounds = array<i64: 1, 128>}, {transform_indices = @transform_1, window_bounds = array<i64: 16, 128>}, {transform_indices = @transform_2, window_bounds = array<i64: 16, 128>}]} {
    %0 = tpu.iota {dimensions = array<i32: 0>} : vector<16x128xi32>
    %c16_i32 = arith.constant 16 : i32
    %1 = arith.muli %arg0, %c16_i32 : i32
    %2 = vector.broadcast %1 : i32 to vector<16x128xi32>
    %3 = arith.addi %0, %2 : vector<16x128xi32>
    %4 = arith.sitofp %3 : vector<16x128xi32> to vector<16x128xf32>
    %c0 = arith.constant 0 : index
    %c0_0 = arith.constant 0 : index
    %5 = vector.load %arg1[%c0, %c0_0] : memref<1x128xf32, #tpu.memory_space<vmem>>, vector<1x128xf32>
    %6 = vector.broadcast %5 : vector<1x128xf32> to vector<16x128xf32>
    %7 = arith.mulf %4, %6 : vector<16x128xf32>
    %8 = math.cos %7 : vector<16x128xf32>
    %c0_1 = arith.constant 0 : index
    %c0_2 = arith.constant 0 : index
    %9 = vector.load %arg2[%c0_1, %c0_2] : memref<16x128xf32, #tpu.memory_space<vmem>>, vector<16x128xf32>
    tpu.vector_store %arg2[%c0_1, %c0_2], %8 {strides = array<i32>} : memref<16x128xf32, #tpu.memory_space<vmem>>, vector<16x128xf32>,
    %10 = math.sin %7 : vector<16x128xf32>
    %c0_3 = arith.constant 0 : index
    %c0_4 = arith.constant 0 : index
    %11 = vector.load %arg3[%c0_3, %c0_4] : memref<16x128xf32, #tpu.memory_space<vmem>>, vector<16x128xf32>
    tpu.vector_store %arg3[%c0_3, %c0_4], %10 {strides = array<i32>} : memref<16x128xf32, #tpu.memory_space<vmem>>, vector<16x128xf32>,
    return
  }
  func.func @transform_0(%arg0: i32) -> (i32, i32) {
    %c0_i32 = arith.constant 0 : i32
    %c0_i32_0 = arith.constant 0 : i32
    %c0_i32_1 = arith.constant 0 : i32
    return %c0_i32, %c0_i32_0 : i32, i32
  }
  func.func @transform_1(%arg0: i32) -> (i32, i32) {
    %c0_i32 = arith.constant 0 : i32
    %c0_i32_0 = arith.constant 0 : i32
    return %arg0, %c0_i32 : i32, i32
  }
  func.func @transform_2(%arg0: i32) -> (i32, i32) {
    %c0_i32 = arith.constant 0 : i32
    %c0_i32_0 = arith.constant 0 : i32
    return %arg0, %c0_i32 : i32, i32
  }
}

</mosaic_0001>

<llo_original>
// kernel: tpu_custom_call.1
$region0: #{tpu_custom_call.1}
  #allocation0 [shape = 'u32[]', space=smem, size = 0x4, offset = 0x4, fixed_abs, tag = 'smem constant byte address 0x4 - core index']
  #allocation1 [shape = 'u32[144,128]{1,0:T(1,128)}', space=vmem, size = 0x12000, scoped, tag = 'internal scratch']
  %s0 = inlined_call_operand.hbm [shape: f32[1,128], index: 0, kind: input, shape index: {}]
  %s1 = inlined_call_operand.hbm [shape: f32[16,128], index: 1, kind: output, shape index: {0}]
  %s2 = inlined_call_operand.hbm [shape: f32[16,128], index: 2, kind: output, shape index: {1}]
  %3 = xla_tuple %s1, %s2
  %s4 = sld [smem:[#allocation0]]
  $region26: #{tpu_custom_call.1} parent=0
    _
  %s6 = ssub.s32 1, %s4
  %s7 = scalar_select 0, %s6, %s4
  $region1: #{tpu_custom_call.1} parent=0
    #allocation2 [shape = 'u8[512]{0}', space=vmem, size = 0x400, scoped, tag = 'input window, operand 0, single buffered']
    #allocation3 [shape = 's32[1]{0}', space=sflag, size = 0x4, scoped, tag = 'scoped memory for tpu_custom_call.1']
    #allocation4 [shape = 's32[1]{0}', space=sflag, size = 0x4, scoped, tag = 'scoped memory for tpu_custom_call.1']
    #allocation5 [shape = 'u8[8192]{0}', space=vmem, size = 0x2000, scoped, tag = 'output window, operand 0, single buffered']
    #allocation6 [shape = 'u8[8192]{0}', space=vmem, size = 0x2000, scoped, tag = 'output window, operand 1, single buffered']
    #allocation7 [shape = 's32[1]{0}', space=sflag, size = 0x4, scoped, tag = 'scoped memory for tpu_custom_call.1']
    %8 = vsyncpa [#allocation3], 0
    %9 = vsyncpa [#allocation4], 0
    %10 = vsyncpa [#allocation7], 0
    // Predicated region
    $region2: #{tpu_custom_call.1} parent=1 // pred_check
      _
    $region3: #{tpu_custom_call.1} parent=1 // pred_check_branch
      %12 = sbr.rel (0) target = $region5
    $region4: #{tpu_custom_call.1} parent=1 // pred_region
      %s14 = ssub.s32 16, 16
      %15 = vsyncadd [#allocation3], %s14
      %s17 = sshll.u32 [#allocation2], 4
      %s18 = int_to_ptr.vmem [resolvable:$true] %s17
      %20 = dma.hbm_to_vmem [thread:$0]  %s0, 16, %s18, [#allocation3]
    $region5: #{tpu_custom_call.1} parent=1 // pred_fallthru
      _
    // Predicated region
    $region6: #{tpu_custom_call.1} parent=1 // pred_check
      _
    $region7: #{tpu_custom_call.1} parent=1 // pred_check_branch
      %22 = sbr.rel (0) target = $region9
    $region8: #{tpu_custom_call.1} parent=1 // pred_region
      %23 = dma.done [#allocation3], 16
    $region9: #{tpu_custom_call.1} parent=1 // pred_fallthru
      _
    %v24 = vlaneseq
    %v25 = vshrl.u32 %v24, 7
    %v26 = vadd.s32 %v25, 8
    %s27 = smul.u32 0, 16
    %v28 = vstv %s27
    %v29 = vadd.s32 %v25, %v28
    %v30 = vadd.s32 %v26, %v28
    %v31 = vcvt.s32.f32 %v29
    %v32 = vcvt.s32.f32 %v30
    %v33 = vld [vmem:[#allocation2] sm:$0x1]
    %v35 = vlaneseq
    %v36 = vshrl.u32 %v35, 7
    %v37 = vsub.s32 0, %v36
    %v38 = vrot.slane %v33, %v37
    %v40 = vmul.f32 %v31, %v38
    %v41 = vmul.f32 %v32, %v38
    %v42 = vand.u32 2147483647, %v40
    %vm43 = vcmp.le.f32.partialorder %v42, 0.7853982
    %vm44 = vcmp.lt.s32.totalorder %v40, 0
    %v45 = vand.u32 %v40, 2139095040
    %v46 = vshrl.u32 %v45, 23
    %v47 = vsub.s32 %v46, 127
    %v48 = vand.u32 2147483647, %v40
    %v49 = vand.u32 %v48, 8388607
    %v50 = vor.u32 %v49, 8388608
    %v51 = vsub.s32 0, %v50
    %v52 = vadd.s32 %v47, 1
    %vm53 = vcmp.gt.s32.totalorder %v52, 0
    %v54 = vsel %vm53, %v52, 0
    %v55 = vshrl.u32 %v54, 5
    %v56 = vand.u32 %v54, 31
    %v57 = vsub.s32 32, %v56
    %v58 = vshrl.u32 683565275, %v57
    %v59 = vshll.u32 683565275, %v56
    %v60 = vshrl.u32 2475754826, %v57
    %v61 = vor.u32 %v59, %v60
    %v62 = vshll.u32 2475754826, %v56
    %v63 = vshrl.u32 2131351028, %v57
    %v64 = vor.u32 %v62, %v63
    %v65 = vshll.u32 2131351028, %v56
    %v66 = vshrl.u32 2102212464, %v57
    %v67 = vor.u32 %v65, %v66
    %v68 = vshll.u32 2102212464, %v56
    %v69 = vshrl.u32 920167782, %v57
    %v70 = vor.u32 %v68, %v69
    %v71 = vshll.u32 920167782, %v56
    %v72 = vshrl.u32 1326507024, %v57
    %v73 = vor.u32 %v71, %v72
    %vm74 = vcmp.lt.s32.totalorder %v55, 1
    %vm75 = vcmp.lt.s32.totalorder %v55, 2
    %vm76 = vcmp.lt.s32.totalorder %v55, 3
    %vm77 = vcmp.lt.s32.totalorder %v55, 4
    %v78 = vsel %vm74, %v58, %v61
    %v79 = vsel %vm77, %v67, 2102212464
    %v80 = vsel %vm76, %v64, %v79
    %v81 = vsel %vm75, %v78, %v80
    %v82 = vsel %vm74, %v61, %v64
    %v83 = vsel %vm77, %v70, 920167782
    %v84 = vsel %vm76, %v67, %v83
    %v85 = vsel %vm75, %v82, %v84
    %v86 = vsel %vm74, %v64, %v67
    %v87 = vsel %vm77, %v73, 1326507024
    %v88 = vsel %vm76, %v70, %v87
    %v89 = vsel %vm75, %v86, %v88
    %v90 = vshll.u32 %v50, 8
    %v91 = vmul.u32.u64.compose %v90, %v89
    %v92 = vextract.low.u32 %v91
    %v93 = vextract.high.u32 %v91
    %v94 = vmul.u32.u64.compose %v90, %v85
    %v95 = vextract.low.u32 %v94
    %v96 = vextract.high.u32 %v94
    %v97 = vmul.u32 %v90, %v81
    %v98 = vadd.s32 %v93, %v95
    %vm99 = vc.u32 %v93, %v95
    %v100 = vadd.s32 %v96, 1
    %v101 = vsel %vm99, %v100, %v96
    %v102 = vadd.s32 %v97, %v101
    %v103 = vadd.s32 %v102, 536870912
    %v104 = vshrl.u32 %v103, 30
    %v105 = vshll.u32 %v104, 30
    %v106 = vsub.s32 %v102, %v105
    %vm107 = vcmp.lt.s32.totalorder %v106, 0
    %v108 = vsub.s32 0, %v106
    %v109 = vsel %vm107, %v108, %v106
    %v110 = vclz %v109
    %v111 = vsub.s32 %v110, 2
    %vm112 = vcmp.gt.s32.totalorder 0, %v111
    %v113 = vsel %vm112, 0, %v111
    %v114 = vsub.s32 32, %v113
    %v115 = vshll.u32 %v106, %v113
    %v116 = vshrl.u32 %v98, %v114
    %v117 = vor.u32 %v115, %v116
    %v118 = vsub.s32 4294967266, %v113
    %v119 = vadd.s32 %v118, 127
    %v120 = vshll.u32 %v119, 23
    %v121 = vor.u32 4788187, %v120
    %v122 = vand.u32 2147483647, %v121
    %v124 = vcvt.s32.f32 %v117
    %v125 = vmul.f32 %v124, %v122
    %v126 = vxor.u32 %v125, 2147483648
    %v127 = vsel %vm44, %v126, %v125
    %v128 = vsub.s32 4, %v104
    %v129 = vsel %vm44, %v128, %v104
    %v130 = vsel %vm43, %v40, %v127
    %v131 = vsel %vm43, 0, %v129
    %v132 = vcosq.f32.pop %v130
    %v133 = vsinq.f32.pop %v130
    %vm134 = vweird.f32 %v40
    %v135 = vand.u32 %v131, 3
    %vm136 = vcmp.lt.s32.totalorder %v135, 2
    %vm137 = vcmp.eq.s32.totalorder %v135, 0
    %v138 = vxor.u32 %v133, 2147483648
    %v139 = vsel %vm137, %v132, %v138
    %vm140 = vcmp.eq.s32.totalorder %v135, 2
    %v141 = vxor.u32 %v132, 2147483648
    %v142 = vsel %vm140, %v141, %v133
    %v143 = vsel %vm136, %v139, %v142
    %v144 = vsel %vm134, nan, %v143
    %v145 = vand.u32 2147483647, %v41
    %vm146 = vcmp.le.f32.partialorder %v145, 0.7853982
    %vm147 = vcmp.lt.s32.totalorder %v41, 0
    %v148 = vand.u32 %v41, 2139095040
    %v149 = vshrl.u32 %v148, 23
    %v150 = vsub.s32 %v149, 127
    %v151 = vand.u32 2147483647, %v41
    %v152 = vand.u32 %v151, 8388607
    %v153 = vor.u32 %v152, 8388608
    %v154 = vsub.s32 0, %v153
    %v155 = vadd.s32 %v150, 1
    %vm156 = vcmp.gt.s32.totalorder %v155, 0
    %v157 = vsel %vm156, %v155, 0
    %v158 = vshrl.u32 %v157, 5
    %v159 = vand.u32 %v157, 31
    %v160 = vsub.s32 32, %v159
    %v161 = vshrl.u32 683565275, %v160
    %v162 = vshll.u32 683565275, %v159
    %v163 = vshrl.u32 2475754826, %v160
    %v164 = vor.u32 %v162, %v163
    %v165 = vshll.u32 2475754826, %v159
    %v166 = vshrl.u32 2131351028, %v160
    %v167 = vor.u32 %v165, %v166
    %v168 = vshll.u32 2131351028, %v159
    %v169 = vshrl.u32 2102212464, %v160
    %v170 = vor.u32 %v168, %v169
    %v171 = vshll.u32 2102212464, %v159
    %v172 = vshrl.u32 920167782, %v160
    %v173 = vor.u32 %v171, %v172
    %v174 = vshll.u32 920167782, %v159
    %v175 = vshrl.u32 1326507024, %v160
    %v176 = vor.u32 %v174, %v175
    %vm177 = vcmp.lt.s32.totalorder %v158, 1
    %vm178 = vcmp.lt.s32.totalorder %v158, 2
    %vm179 = vcmp.lt.s32.totalorder %v158, 3
    %vm180 = vcmp.lt.s32.totalorder %v158, 4
    %v181 = vsel %vm177, %v161, %v164
    %v182 = vsel %vm180, %v170, 2102212464
    %v183 = vsel %vm179, %v167, %v182
    %v184 = vsel %vm178, %v181, %v183
    %v185 = vsel %vm177, %v164, %v167
    %v186 = vsel %vm180, %v173, 920167782
    %v187 = vsel %vm179, %v170, %v186
    %v188 = vsel %vm178, %v185, %v187
    %v189 = vsel %vm177, %v167, %v170
    %v190 = vsel %vm180, %v176, 1326507024
    %v191 = vsel %vm179, %v173, %v190
    %v192 = vsel %vm178, %v189, %v191
    %v193 = vshll.u32 %v153, 8
    %v194 = vmul.u32.u64.compose %v193, %v192
    %v195 = vextract.low.u32 %v194
    %v196 = vextract.high.u32 %v194
    %v197 = vmul.u32.u64.compose %v193, %v188
    %v198 = vextract.low.u32 %v197
    %v199 = vextract.high.u32 %v197
    %v200 = vmul.u32 %v193, %v184
    %v201 = vadd.s32 %v196, %v198
    %vm202 = vc.u32 %v196, %v198
    %v203 = vadd.s32 %v199, 1
    %v204 = vsel %vm202, %v203, %v199
    %v205 = vadd.s32 %v200, %v204
    %v206 = vadd.s32 %v205, 536870912
    %v207 = vshrl.u32 %v206, 30
    %v208 = vshll.u32 %v207, 30
    %v209 = vsub.s32 %v205, %v208
    %vm210 = vcmp.lt.s32.totalorder %v209, 0
    %v211 = vsub.s32 0, %v209
    %v212 = vsel %vm210, %v211, %v209
    %v213 = vclz %v212
    %v214 = vsub.s32 %v213, 2
    %vm215 = vcmp.gt.s32.totalorder 0, %v214
    %v216 = vsel %vm215, 0, %v214
    %v217 = vsub.s32 32, %v216
    %v218 = vshll.u32 %v209, %v216
    %v219 = vshrl.u32 %v201, %v217
    %v220 = vor.u32 %v218, %v219
    %v221 = vsub.s32 4294967266, %v216
    %v222 = vadd.s32 %v221, 127
    %v223 = vshll.u32 %v222, 23
    %v224 = vor.u32 4788187, %v223
    %v225 = vand.u32 2147483647, %v224
    %v227 = vcvt.s32.f32 %v220
    %v228 = vmul.f32 %v227, %v225
    %v229 = vxor.u32 %v228, 2147483648
    %v230 = vsel %vm147, %v229, %v228
    %v231 = vsub.s32 4, %v207
    %v232 = vsel %vm147, %v231, %v207
    %v233 = vsel %vm146, %v41, %v230
    %v234 = vsel %vm146, 0, %v232
    %v235 = vcosq.f32.pop %v233
    %v236 = vsinq.f32.pop %v233
    %vm237 = vweird.f32 %v41
    %v238 = vand.u32 %v234, 3
    %vm239 = vcmp.lt.s32.totalorder %v238, 2
    %vm240 = vcmp.eq.s32.totalorder %v238, 0
    %v241 = vxor.u32 %v236, 2147483648
    %v242 = vsel %vm240, %v235, %v241
    %vm243 = vcmp.eq.s32.totalorder %v238, 2
    %v244 = vxor.u32 %v235, 2147483648
    %v245 = vsel %vm243, %v244, %v236
    %v246 = vsel %vm239, %v242, %v245
    %v247 = vsel %vm237, nan, %v246
    %248 = vst [vmem:[#allocation5] sm:$0xff] %v144
    %249 = vst [vmem:[#allocation5 + $0x8] sm:$0xff] %v247
    %v250 = vand.u32 2147483647, %v40
    %vm251 = vcmp.le.f32.partialorder %v250, 0.7853982
    %vm252 = vcmp.lt.s32.totalorder %v40, 0
    %v253 = vand.u32 %v40, 2139095040
    %v254 = vshrl.u32 %v253, 23
    %v255 = vsub.s32 %v254, 127
    %v256 = vand.u32 2147483647, %v40
    %v257 = vand.u32 %v256, 8388607
    %v258 = vor.u32 %v257, 8388608
    %v259 = vsub.s32 0, %v258
    %v260 = vadd.s32 %v255, 1
    %vm261 = vcmp.gt.s32.totalorder %v260, 0
    %v262 = vsel %vm261, %v260, 0
    %v263 = vshrl.u32 %v262, 5
    %v264 = vand.u32 %v262, 31
    %v265 = vsub.s32 32, %v264
    %v266 = vshrl.u32 683565275, %v265
    %v267 = vshll.u32 683565275, %v264
    %v268 = vshrl.u32 2475754826, %v265
    %v269 = vor.u32 %v267, %v268
    %v270 = vshll.u32 2475754826, %v264
    %v271 = vshrl.u32 2131351028, %v265
    %v272 = vor.u32 %v270, %v271
    %v273 = vshll.u32 2131351028, %v264
    %v274 = vshrl.u32 2102212464, %v265
    %v275 = vor.u32 %v273, %v274
    %v276 = vshll.u32 2102212464, %v264
    %v277 = vshrl.u32 920167782, %v265
    %v278 = vor.u32 %v276, %v277
    %v279 = vshll.u32 920167782, %v264
    %v280 = vshrl.u32 1326507024, %v265
    %v281 = vor.u32 %v279, %v280
    %vm282 = vcmp.lt.s32.totalorder %v263, 1
    %vm283 = vcmp.lt.s32.totalorder %v263, 2
    %vm284 = vcmp.lt.s32.totalorder %v263, 3
    %vm285 = vcmp.lt.s32.totalorder %v263, 4
    %v286 = vsel %vm282, %v266, %v269
    %v287 = vsel %vm285, %v275, 2102212464
    %v288 = vsel %vm284, %v272, %v287
    %v289 = vsel %vm283, %v286, %v288
    %v290 = vsel %vm282, %v269, %v272
    %v291 = vsel %vm285, %v278, 920167782
    %v292 = vsel %vm284, %v275, %v291
    %v293 = vsel %vm283, %v290, %v292
    %v294 = vsel %vm282, %v272, %v275
    %v295 = vsel %vm285, %v281, 1326507024
    %v296 = vsel %vm284, %v278, %v295
    %v297 = vsel %vm283, %v294, %v296
    %v298 = vshll.u32 %v258, 8
    %v299 = vmul.u32.u64.compose %v298, %v297
    %v300 = vextract.low.u32 %v299
    %v301 = vextract.high.u32 %v299
    %v302 = vmul.u32.u64.compose %v298, %v293
    %v303 = vextract.low.u32 %v302
    %v304 = vextract.high.u32 %v302
    %v305 = vmul.u32 %v298, %v289
    %v306 = vadd.s32 %v301, %v303
    %vm307 = vc.u32 %v301, %v303
    %v308 = vadd.s32 %v304, 1
    %v309 = vsel %vm307, %v308, %v304
    %v310 = vadd.s32 %v305, %v309
    %v311 = vadd.s32 %v310, 536870912
    %v312 = vshrl.u32 %v311, 30
    %v313 = vshll.u32 %v312, 30
    %v314 = vsub.s32 %v310, %v313
    %vm315 = vcmp.lt.s32.totalorder %v314, 0
    %v316 = vsub.s32 0, %v314
    %v317 = vsel %vm315, %v316, %v314
    %v318 = vclz %v317
    %v319 = vsub.s32 %v318, 2
    %vm320 = vcmp.gt.s32.totalorder 0, %v319
    %v321 = vsel %vm320, 0, %v319
    %v322 = vsub.s32 32, %v321
    %v323 = vshll.u32 %v314, %v321
    %v324 = vshrl.u32 %v306, %v322
    %v325 = vor.u32 %v323, %v324
    %v326 = vsub.s32 4294967266, %v321
    %v327 = vadd.s32 %v326, 127
    %v328 = vshll.u32 %v327, 23
    %v329 = vor.u32 4788187, %v328
    %v330 = vand.u32 2147483647, %v329
    %v332 = vcvt.s32.f32 %v325
    %v333 = vmul.f32 %v332, %v330
    %v334 = vxor.u32 %v333, 2147483648
    %v335 = vsel %vm252, %v334, %v333
    %v336 = vsub.s32 4, %v312
    %v337 = vsel %vm252, %v336, %v312
    %v338 = vsel %vm251, %v40, %v335
    %v339 = vsel %vm251, 0, %v337
    %v340 = vcosq.f32.pop %v338
    %v341 = vsinq.f32.pop %v338
    %vm342 = vweird.f32 %v40
    %v343 = vadd.s32 %v339, 3
    %v344 = vand.u32 %v343, 3
    %vm345 = vcmp.lt.s32.totalorder %v344, 2
    %vm346 = vcmp.eq.s32.totalorder %v344, 0
    %v347 = vxor.u32 %v341, 2147483648
    %v348 = vsel %vm346, %v340, %v347
    %vm349 = vcmp.eq.s32.totalorder %v344, 2
    %v350 = vxor.u32 %v340, 2147483648
    %v351 = vsel %vm349, %v350, %v341
    %v352 = vsel %vm345, %v348, %v351
    %v353 = vsel %vm342, nan, %v352
    %v354 = vand.u32 2147483647, %v41
    %vm355 = vcmp.le.f32.partialorder %v354, 0.7853982
    %vm356 = vcmp.lt.s32.totalorder %v41, 0
    %v357 = vand.u32 %v41, 2139095040
    %v358 = vshrl.u32 %v357, 23
    %v359 = vsub.s32 %v358, 127
    %v360 = vand.u32 2147483647, %v41
    %v361 = vand.u32 %v360, 8388607
    %v362 = vor.u32 %v361, 8388608
    %v363 = vsub.s32 0, %v362
    %v364 = vadd.s32 %v359, 1
    %vm365 = vcmp.gt.s32.totalorder %v364, 0
    %v366 = vsel %vm365, %v364, 0
    %v367 = vshrl.u32 %v366, 5
    %v368 = vand.u32 %v366, 31
    %v369 = vsub.s32 32, %v368
    %v370 = vshrl.u32 683565275, %v369
    %v371 = vshll.u32 683565275, %v368
    %v372 = vshrl.u32 2475754826, %v369
    %v373 = vor.u32 %v371, %v372
    %v374 = vshll.u32 2475754826, %v368
    %v375 = vshrl.u32 2131351028, %v369
    %v376 = vor.u32 %v374, %v375
    %v377 = vshll.u32 2131351028, %v368
    %v378 = vshrl.u32 2102212464, %v369
    %v379 = vor.u32 %v377, %v378
    %v380 = vshll.u32 2102212464, %v368
    %v381 = vshrl.u32 920167782, %v369
    %v382 = vor.u32 %v380, %v381
    %v383 = vshll.u32 920167782, %v368
    %v384 = vshrl.u32 1326507024, %v369
    %v385 = vor.u32 %v383, %v384
    %vm386 = vcmp.lt.s32.totalorder %v367, 1
    %vm387 = vcmp.lt.s32.totalorder %v367, 2
    %vm388 = vcmp.lt.s32.totalorder %v367, 3
    %vm389 = vcmp.lt.s32.totalorder %v367, 4
    %v390 = vsel %vm386, %v370, %v373
    %v391 = vsel %vm389, %v379, 2102212464
    %v392 = vsel %vm388, %v376, %v391
    %v393 = vsel %vm387, %v390, %v392
    %v394 = vsel %vm386, %v373, %v376
    %v395 = vsel %vm389, %v382, 920167782
    %v396 = vsel %vm388, %v379, %v395
    %v397 = vsel %vm387, %v394, %v396
    %v398 = vsel %vm386, %v376, %v379
    %v399 = vsel %vm389, %v385, 1326507024
    %v400 = vsel %vm388, %v382, %v399
    %v401 = vsel %vm387, %v398, %v400
    %v402 = vshll.u32 %v362, 8
    %v403 = vmul.u32.u64.compose %v402, %v401
    %v404 = vextract.low.u32 %v403
    %v405 = vextract.high.u32 %v403
    %v406 = vmul.u32.u64.compose %v402, %v397
    %v407 = vextract.low.u32 %v406
    %v408 = vextract.high.u32 %v406
    %v409 = vmul.u32 %v402, %v393
    %v410 = vadd.s32 %v405, %v407
    %vm411 = vc.u32 %v405, %v407
    %v412 = vadd.s32 %v408, 1
    %v413 = vsel %vm411, %v412, %v408
    %v414 = vadd.s32 %v409, %v413
    %v415 = vadd.s32 %v414, 536870912
    %v416 = vshrl.u32 %v415, 30
    %v417 = vshll.u32 %v416, 30
    %v418 = vsub.s32 %v414, %v417
    %vm419 = vcmp.lt.s32.totalorder %v418, 0
    %v420 = vsub.s32 0, %v418
    %v421 = vsel %vm419, %v420, %v418
    %v422 = vclz %v421
    %v423 = vsub.s32 %v422, 2
    %vm424 = vcmp.gt.s32.totalorder 0, %v423
    %v425 = vsel %vm424, 0, %v423
    %v426 = vsub.s32 32, %v425
    %v427 = vshll.u32 %v418, %v425
    %v428 = vshrl.u32 %v410, %v426
    %v429 = vor.u32 %v427, %v428
    %v430 = vsub.s32 4294967266, %v425
    %v431 = vadd.s32 %v430, 127
    %v432 = vshll.u32 %v431, 23
    %v433 = vor.u32 4788187, %v432
    %v434 = vand.u32 2147483647, %v433
    %v436 = vcvt.s32.f32 %v429
    %v437 = vmul.f32 %v436, %v434
    %v438 = vxor.u32 %v437, 2147483648
    %v439 = vsel %vm356, %v438, %v437
    %v440 = vsub.s32 4, %v416
    %v441 = vsel %vm356, %v440, %v416
    %v442 = vsel %vm355, %v41, %v439
    %v443 = vsel %vm355, 0, %v441
    %v444 = vcosq.f32.pop %v442
    %v445 = vsinq.f32.pop %v442
    %vm446 = vweird.f32 %v41
    %v447 = vadd.s32 %v443, 3
    %v448 = vand.u32 %v447, 3
    %vm449 = vcmp.lt.s32.totalorder %v448, 2
    %vm450 = vcmp.eq.s32.totalorder %v448, 0
    %v451 = vxor.u32 %v445, 2147483648
    %v452 = vsel %vm450, %v444, %v451
    %vm453 = vcmp.eq.s32.totalorder %v448, 2
    %v454 = vxor.u32 %v444, 2147483648
    %v455 = vsel %vm453, %v454, %v445
    %v456 = vsel %vm449, %v452, %v455
    %v457 = vsel %vm446, nan, %v456
    %458 = vst [vmem:[#allocation6] sm:$0xff] %v353
    %459 = vst [vmem:[#allocation6 + $0x8] sm:$0xff] %v457
    // Predicated region
    $region10: #{tpu_custom_call.1} parent=1 // pred_check
      _
    $region11: #{tpu_custom_call.1} parent=1 // pred_check_branch
      %461 = sbr.rel (0) target = $region13
    $region12: #{tpu_custom_call.1} parent=1 // pred_region
      %s463 = ssub.s32 256, 256
      %464 = vsyncadd [#allocation4], %s463
      %s465 = sshll.u32 [#allocation5], 4
      %s466 = int_to_ptr.vmem [resolvable:$true] %s465
      %471 = dma.vmem_to_hbm [thread:$0]  %s466, 256, %s1, [#allocation4], 128, 128, 8
    $region13: #{tpu_custom_call.1} parent=1 // pred_fallthru
      _
    // Predicated region
    $region14: #{tpu_custom_call.1} parent=1 // pred_check
      _
    $region15: #{tpu_custom_call.1} parent=1 // pred_check_branch
      %473 = sbr.rel (0) target = $region17
    $region16: #{tpu_custom_call.1} parent=1 // pred_region
      %s475 = ssub.s32 256, 256
      %476 = vsyncadd [#allocation7], %s475
      %s477 = sshll.u32 [#allocation6], 4
      %s478 = int_to_ptr.vmem [resolvable:$true] %s477
      %483 = dma.vmem_to_hbm [thread:$0]  %s478, 256, %s2, [#allocation7], 128, 128, 8
    $region17: #{tpu_custom_call.1} parent=1 // pred_fallthru
      _
    // Predicated region
    $region18: #{tpu_custom_call.1} parent=1 // pred_check
      _
    $region19: #{tpu_custom_call.1} parent=1 // pred_check_branch
      %485 = sbr.rel (0) target = $region21
    $region20: #{tpu_custom_call.1} parent=1 // pred_region
      %486 = dma.done [#allocation4], 256
    $region21: #{tpu_custom_call.1} parent=1 // pred_fallthru
      _
    // Predicated region
    $region22: #{tpu_custom_call.1} parent=1 // pred_check
      _
    $region23: #{tpu_custom_call.1} parent=1 // pred_check_branch
      %488 = sbr.rel (0) target = $region25
    $region24: #{tpu_custom_call.1} parent=1 // pred_region
      %489 = dma.done [#allocation7], 256
    $region25: #{tpu_custom_call.1} parent=1 // pred_fallthru
      _
    %490 = vsyncpa [#allocation3], 1
    %491 = vsyncpa [#allocation4], 1
    %492 = vsyncpa [#allocation7], 1

</llo_original>
